<compile_context>
chip_gen: v7x
topology: tpu7x:2x2x1
jax: 0.10.0
libtpu: 0.0.40
codegen_flags: <defaults>
</compile_context>

<pallas_src>
import jax
import jax.numpy as jnp
from jax.experimental import pallas as pl
from jax.experimental.pallas import tpu as pltpu


def critic_kernel(x_ref, w1_ref, b1_ref, w2_ref, b2_ref, o_ref):
    # fc1 on the MXU, f32 accumulation (inputs may be bf16).
    h = jnp.dot(x_ref[...], w1_ref[...], preferred_element_type=jnp.float32)
    h = h + b1_ref[...].astype(jnp.float32)          # (1, H) broadcast over rows
    h = jnp.maximum(h, 0.0)                          # ReLU on the VPU, f32
    # fc2: output width is 1 -> VPU mul + cross-lane (XLU) reduction instead of
    # an MXU matmul whose result would mask 127/128 lanes.
    w2 = w2_ref[...].astype(jnp.float32)             # (1, H)
    v = jnp.sum(h * w2, axis=-1, keepdims=True)      # (TB, 1)
    o_ref[...] = (v + b2_ref[0, 0]).astype(o_ref.dtype)


def _round_down_multiple(x, m):
    return max(m, (x // m) * m)


def critic_forward(x, w1, b1, w2, b2, *, block_b=None, compute_dtype=None,
                   num_batch_shards=1, vmem_budget_bytes=12 << 20):
    """relu(x @ w1 + b1) @ w2.T + b2, with w2 stored as (1, H).

    compute_dtype=jnp.bfloat16 is safe on v5e/v6e/v7x (f32 MXU accumulation,
    f32 epilogue). num_batch_shards=2 is useful on v7x (2 TCs) at large B.
    """
    B, S = x.shape
    H = w1.shape[1]
    assert w1.shape == (S, H)
    assert b1.shape == (1, H)
    assert w2.shape == (1, H)
    assert b2.shape == (1, 1)

    out_dtype = x.dtype

    # Optional reduced-precision matmul inputs (halves x / w1 DMA bytes; the
    # MXU on every generation accepts bf16 and accumulates in f32).
    if compute_dtype is not None:
        x = x.astype(compute_dtype)
        w1 = w1.astype(compute_dtype)

    in_itemsize = x.dtype.itemsize
    out_itemsize = jnp.dtype(out_dtype).itemsize
    # Sub-32-bit dtypes pack along sublanes: bf16 -> 16-row granularity.
    sublane = 8 if in_itemsize >= 4 else (16 if in_itemsize == 2 else 32)

    # Resident (single-buffered) weight bytes.
    weight_bytes = (S * H * w1.dtype.itemsize
                    + H * b1.dtype.itemsize
                    + H * w2.dtype.itemsize)

    # Batch tile: largest block that fits the VMEM budget with x/out
    # double-buffered and weights single-buffered; default = one grid step
    # whenever B fits.
    if block_b is None:
        per_row = 2 * (S * in_itemsize + out_itemsize)
        avail = max(vmem_budget_bytes - weight_bytes, per_row * sublane)
        block_b = min(B, avail // per_row)
    # Optional even split across TensorCores (v7x megacore) at large B.
    if num_batch_shards > 1 and B >= num_batch_shards * sublane:
        shard = -(-B // num_batch_shards)                  # ceil
        shard = -(-shard // sublane) * sublane             # round up to sublane
        block_b = min(block_b, shard)
    if B >= sublane:
        block_b = _round_down_multiple(min(block_b, B), sublane)
    else:
        block_b = B
    grid_b = pl.cdiv(B, block_b)

    # Explicit VMEM budget: x/out double-buffered + single-buffered weights
    # + slack for internal scratch. Keeps us honest on v7x (64 MiB physical)
    # and v5e (16 MiB default scoped limit).
    needed = (2 * block_b * S * in_itemsize
              + 2 * block_b * out_itemsize
              + weight_bytes)
    vmem_limit = int(min(64 << 20, max(needed + (2 << 20), 4 << 20)))

    itemsize = lambda a: a.size * a.dtype.itemsize
    cost = pl.CostEstimate(
        flops=2 * B * S * H + 2 * B * H,
        transcendentals=0,
        bytes_accessed=(itemsize(x) + itemsize(w1) + itemsize(b1)
                        + itemsize(w2) + itemsize(b2) + B * out_itemsize),
    )

    return pl.pallas_call(
        critic_kernel,
        out_shape=jax.ShapeDtypeStruct((B, 1), out_dtype),
        grid_spec=pltpu.PrefetchScalarGridSpec(
            num_scalar_prefetch=0,
            grid=(grid_b,),
            in_specs=[
                # x: tiled over B, double-buffered by the pipeline.
                pl.BlockSpec((block_b, S), lambda i: (i, 0)),
                # Resident operands: constant index_map -> single-buffer them.
                pl.BlockSpec((S, H), lambda i: (0, 0),
                             pipeline_mode=pl.Buffered(1)),
                pl.BlockSpec((1, H), lambda i: (0, 0),
                             pipeline_mode=pl.Buffered(1)),
                pl.BlockSpec((1, H), lambda i: (0, 0),
                             pipeline_mode=pl.Buffered(1)),
                # b2 scalar lives in SMEM (no padded VMEM tile).
                pl.BlockSpec(memory_space=pltpu.MemorySpace.SMEM),
            ],
            out_specs=pl.BlockSpec((block_b, 1), lambda i: (i, 0)),
        ),
        compiler_params=pltpu.CompilerParams(
            dimension_semantics=("parallel",),
            vmem_limit_bytes=vmem_limit),
        cost_estimate=cost,
    )(x, w1, b1, w2, b2)


def init_params(key, state_size, hidden_size, dtype=jnp.float32):
    """Deterministic init mimicking nn.Linear default (uniform +/- 1/sqrt(fan_in))."""
    k1, k2, k3, k4 = jax.random.split(key, 4)
    bound1 = 1.0 / jnp.sqrt(jnp.float32(state_size))
    bound2 = 1.0 / jnp.sqrt(jnp.float32(hidden_size))
    w1 = jax.random.uniform(k1, (state_size, hidden_size), dtype,
                            minval=-bound1, maxval=bound1)
    b1 = jax.random.uniform(k2, (1, hidden_size), dtype,
                            minval=-bound1, maxval=bound1)
    w2 = jax.random.uniform(k3, (1, hidden_size), dtype,   # fc2 weight as a row
                            minval=-bound2, maxval=bound2)
    b2 = jax.random.uniform(k4, (1, 1), dtype,
                            minval=-bound2, maxval=bound2)
    return w1, b1, w2, b2


def critic_ref(x, w1, b1, w2, b2):
    h = jnp.maximum(x @ w1 + b1, 0.0)
    return h @ w2.T + b2


if __name__ == "__main__":
    key = jax.random.PRNGKey(0)
    batch, state_size, hidden_size = 128, 16, 32

    kx, kp = jax.random.split(key)
    x = jax.random.normal(kx, (batch, state_size), jnp.float32)
    w1, b1, w2, b2 = init_params(kp, state_size, hidden_size)

    # f32 path, default (VMEM-budgeted) block_b -> single grid step at B=128.
    out_f32 = jax.block_until_ready(critic_forward(x, w1, b1, w2, b2))
    ref_f32 = critic_ref(x, w1, b1, w2, b2)
    assert out_f32.shape == (batch, 1), out_f32.shape
    assert jnp.allclose(out_f32, ref_f32, atol=1e-5, rtol=1e-5), "f32 mismatch"

    # bf16-matmul path (valid on v5e/v6e/v7x); compare against a reference with
    # the same quantized fc1 inputs (MXU accumulates in f32, so this is tight).
    out_bf16 = jax.block_until_ready(
        critic_forward(x, w1, b1, w2, b2, compute_dtype=jnp.bfloat16))
    x_q = x.astype(jnp.bfloat16).astype(jnp.float32)
    w1_q = w1.astype(jnp.bfloat16).astype(jnp.float32)
    ref_bf16 = critic_ref(x_q, w1_q, b1, w2, b2)
    assert out_bf16.shape == (batch, 1), out_bf16.shape
    assert jnp.allclose(out_bf16, ref_bf16, atol=1e-4, rtol=1e-4), "bf16 mismatch"

    # Tiled + two-shard path (exercises the partial-block mask and the v7x
    # dual-TC split); still matches the f32 reference.
    out_split = jax.block_until_ready(
        critic_forward(x, w1, b1, w2, b2, block_b=48, num_batch_shards=2))
    assert jnp.allclose(out_split, ref_f32, atol=1e-5, rtol=1e-5), "split mismatch"

    print("KERNEL_OK")
</pallas_src>

<mosaic_0001>
module attributes {stable_mosaic.version = 11 : i64} {
  func.func @critic_kernel(%arg0: i32, %arg1: memref<128x16xf32, #tpu.memory_space<vmem>>, %arg2: memref<16x32xf32, #tpu.memory_space<vmem>>, %arg3: memref<1x32xf32, #tpu.memory_space<vmem>>, %arg4: memref<1x32xf32, #tpu.memory_space<vmem>>, %arg5: memref<1x1xf32, #tpu.memory_space<smem>>, %arg6: memref<128x1xf32, #tpu.memory_space<vmem>>) attributes {dimension_semantics = [#tpu.dimension_semantics<parallel>], iteration_bounds = array<i64: 1>, scalar_prefetch = 0 : i64, scratch_operands = 0 : i64, tpu.core_type = #tpu.core_type<tc>, window_params = [{transform_indices = @transform_0, window_bounds = array<i64: 128, 16>}, {pipeline_mode = #tpu.pipeline_mode<synchronous>, transform_indices = @transform_1, window_bounds = array<i64: 16, 32>}, {pipeline_mode = #tpu.pipeline_mode<synchronous>, transform_indices = @transform_2, window_bounds = array<i64: 1, 32>}, {pipeline_mode = #tpu.pipeline_mode<synchronous>, transform_indices = @transform_3, window_bounds = array<i64: 1, 32>}, {transform_indices = @transform_4, window_bounds = array<i64: 1, 1>}, {transform_indices = @transform_5, window_bounds = array<i64: 128, 1>}]} {
    %c0 = arith.constant 0 : index
    %c0_0 = arith.constant 0 : index
    %0 = vector.load %arg1[%c0, %c0_0] : memref<128x16xf32, #tpu.memory_space<vmem>>, vector<128x16xf32>
    %c0_1 = arith.constant 0 : index
    %c0_2 = arith.constant 0 : index
    %1 = vector.load %arg2[%c0_1, %c0_2] : memref<16x32xf32, #tpu.memory_space<vmem>>, vector<16x32xf32>
    %cst = arith.constant dense<0.000000e+00> : vector<128x32xf32>
    %2 = tpu.matmul %0, %1, %cst {dimension_numbers = #tpu.dot_dimension_numbers<[1], [0], [0], [1], [0, 0, 1, 1], [], []>} : vector<128x16xf32>, vector<16x32xf32>, vector<128x32xf32> -> vector<128x32xf32>
    %c0_3 = arith.constant 0 : index
    %c0_4 = arith.constant 0 : index
    %3 = vector.load %arg3[%c0_3, %c0_4] : memref<1x32xf32, #tpu.memory_space<vmem>>, vector<1x32xf32>
    %4 = vector.broadcast %3 : vector<1x32xf32> to vector<128x32xf32>
    %5 = arith.addf %2, %4 : vector<128x32xf32>
    %cst_5 = arith.constant 0.000000e+00 : f32
    %6 = vector.broadcast %cst_5 : f32 to vector<128x32xf32>
    %7 = arith.maximumf %5, %6 : vector<128x32xf32>
    %c0_6 = arith.constant 0 : index
    %c0_7 = arith.constant 0 : index
    %8 = vector.load %arg4[%c0_6, %c0_7] : memref<1x32xf32, #tpu.memory_space<vmem>>, vector<1x32xf32>
    %9 = vector.broadcast %8 : vector<1x32xf32> to vector<128x32xf32>
    %10 = arith.mulf %7, %9 : vector<128x32xf32>
    %cst_8 = arith.constant dense<0.000000e+00> : vector<128xf32>
    %11 = vector.multi_reduction <add>, %10, %cst_8 [1] : vector<128x32xf32> to vector<128xf32>
    %12 = vector.shape_cast %11 : vector<128xf32> to vector<128x1xf32>
    %c0_9 = arith.constant 0 : index
    %c0_10 = arith.constant 0 : index
    %13 = memref.load %arg5[%c0_9, %c0_10] : memref<1x1xf32, #tpu.memory_space<smem>>
    %14 = vector.broadcast %13 : f32 to vector<128x1xf32>
    %15 = arith.addf %12, %14 : vector<128x1xf32>
    %c0_11 = arith.constant 0 : index
    %c0_12 = arith.constant 0 : index
    %16 = vector.load %arg6[%c0_11, %c0_12] : memref<128x1xf32, #tpu.memory_space<vmem>>, vector<128x1xf32>
    tpu.vector_store %arg6[%c0_11, %c0_12], %15 {strides = array<i32>} : memref<128x1xf32, #tpu.memory_space<vmem>>, vector<128x1xf32>,
    return
  }
  func.func @transform_0(%arg0: i32) -> (i32, i32) {
    %c0_i32 = arith.constant 0 : i32
    %c0_i32_0 = arith.constant 0 : i32
    return %arg0, %c0_i32 : i32, i32
  }
  func.func @transform_1(%arg0: i32) -> (i32, i32) {
    %c0_i32 = arith.constant 0 : i32
    %c0_i32_0 = arith.constant 0 : i32
    %c0_i32_1 = arith.constant 0 : i32
    return %c0_i32, %c0_i32_0 : i32, i32
  }
  func.func @transform_2(%arg0: i32) -> (i32, i32) {
    %c0_i32 = arith.constant 0 : i32
    %c0_i32_0 = arith.constant 0 : i32
    %c0_i32_1 = arith.constant 0 : i32
    return %c0_i32, %c0_i32_0 : i32, i32
  }
  func.func @transform_3(%arg0: i32) -> (i32, i32) {
    %c0_i32 = arith.constant 0 : i32
    %c0_i32_0 = arith.constant 0 : i32
    %c0_i32_1 = arith.constant 0 : i32
    return %c0_i32, %c0_i32_0 : i32, i32
  }
  func.func @transform_4(%arg0: i32) -> (i32, i32) {
    %c0_i32 = arith.constant 0 : i32
    %c0_i32_0 = arith.constant 0 : i32
    %c0_i32_1 = arith.constant 0 : i32
    return %c0_i32, %c0_i32_0 : i32, i32
  }
  func.func @transform_5(%arg0: i32) -> (i32, i32) {
    %c0_i32 = arith.constant 0 : i32
    %c0_i32_0 = arith.constant 0 : i32
    return %arg0, %c0_i32 : i32, i32
  }
}

</mosaic_0001>

<llo_original>
// kernel: tpu_custom_call.1
$region0: #{tpu_custom_call.1}
  #allocation0 [shape = 'u32[]', space=smem, size = 0x4, offset = 0x4, fixed_abs, tag = 'smem constant byte address 0x4 - core index']
  #allocation1 [shape = 'u32[144,128]{1,0:T(1,128)}', space=vmem, size = 0x12000, scoped, tag = 'internal scratch']
  #allocation2 [shape = 'f32[1,1]{1,0:T(1,128)S(6)}', space=smem, size = 0x200, scoped, tag = 'scoped memory for tpu_custom_call.1']
  %s0 = inlined_call_operand.vmem [shape: f32[128,16], index: 0, kind: input, shape index: {}]
  %s1 = inlined_call_operand.vmem [shape: f32[16,32], index: 1, kind: input, shape index: {}]
  %s2 = inlined_call_operand.vmem [shape: f32[1,32], index: 2, kind: input, shape index: {}]
  %s3 = inlined_call_operand.vmem [shape: f32[1,32], index: 3, kind: input, shape index: {}]
  %s4 = inlined_call_operand.<no memory space> [shape: f32[1,1], index: 4, kind: input, shape index: {}]
  %s5 = inlined_call_operand.vmem [shape: f32[128,1], index: 5, kind: output, shape index: {}]
  %s6 = sld [smem:[#allocation0]]
  $region30: #{tpu_custom_call.1} parent=0
    _
  %s8 = ssub.s32 1, %s6
  %s9 = scalar_select 0, %s8, %s6
  %10 = sst [smem:[#allocation2]] %s4
  // Predicated region
  $region2: #{tpu_custom_call.1} parent=0 // pred_check
    _
  $region3: #{tpu_custom_call.1} parent=0 // pred_check_branch
    %12 = sbr.rel (0) target = $region5
  $region4: #{tpu_custom_call.1} parent=0 // pred_region
    _
  $region5: #{tpu_custom_call.1} parent=0 // pred_fallthru
    _
  // Predicated region
  $region6: #{tpu_custom_call.1} parent=0 // pred_check
    _
  $region7: #{tpu_custom_call.1} parent=0 // pred_check_branch
    %14 = sbr.rel (0) target = $region9
  $region8: #{tpu_custom_call.1} parent=0 // pred_region
    _
  $region9: #{tpu_custom_call.1} parent=0 // pred_fallthru
    _
  // Predicated region
  $region10: #{tpu_custom_call.1} parent=0 // pred_check
    _
  $region11: #{tpu_custom_call.1} parent=0 // pred_check_branch
    %16 = sbr.rel (0) target = $region13
  $region12: #{tpu_custom_call.1} parent=0 // pred_region
    _
  $region13: #{tpu_custom_call.1} parent=0 // pred_fallthru
    _
  // Predicated region
  $region14: #{tpu_custom_call.1} parent=0 // pred_check
    _
  $region15: #{tpu_custom_call.1} parent=0 // pred_check_branch
    %18 = sbr.rel (0) target = $region17
  $region16: #{tpu_custom_call.1} parent=0 // pred_region
    _
  $region17: #{tpu_custom_call.1} parent=0 // pred_fallthru
    _
  // Predicated region
  $region18: #{tpu_custom_call.1} parent=0 // pred_check
    _
  $region19: #{tpu_custom_call.1} parent=0 // pred_check_branch
    %20 = sbr.rel (0) target = $region21
  $region20: #{tpu_custom_call.1} parent=0 // pred_region
    _
  $region21: #{tpu_custom_call.1} parent=0 // pred_fallthru
    _
  %v21 = vld [vmem:[%s0] sm:$0xff]
  %v22 = vld [vmem:[%s0 + $0x8] sm:$0xff]
  %v23 = vld [vmem:[%s0 + $0x10] sm:$0xff]
  %v24 = vld [vmem:[%s0 + $0x18] sm:$0xff]
  %v25 = vld [vmem:[%s0 + $0x20] sm:$0xff]
  %v26 = vld [vmem:[%s0 + $0x28] sm:$0xff]
  %v27 = vld [vmem:[%s0 + $0x30] sm:$0xff]
  %v28 = vld [vmem:[%s0 + $0x38] sm:$0xff]
  %v29 = vld [vmem:[%s0 + $0x40] sm:$0xff]
  %v30 = vld [vmem:[%s0 + $0x48] sm:$0xff]
  %v31 = vld [vmem:[%s0 + $0x50] sm:$0xff]
  %v32 = vld [vmem:[%s0 + $0x58] sm:$0xff]
  %v33 = vld [vmem:[%s0 + $0x60] sm:$0xff]
  %v34 = vld [vmem:[%s0 + $0x68] sm:$0xff]
  %v35 = vld [vmem:[%s0 + $0x70] sm:$0xff]
  %v36 = vld [vmem:[%s0 + $0x78] sm:$0xff]
  %v37 = vld [vmem:[%s1] sm:$0xff]
  %v38 = vld [vmem:[%s1 + $0x8] sm:$0xff]
  %v39 = vld [vmem:[%s2] sm:$0x1]
  %v41 = vlaneseq
  %v42 = vshrl.u32 %v41, 7
  %v43 = vsub.s32 0, %v42
  %v44 = vrot.slane %v39, %v43
  %vm46 = vcmask 130048
  %v48 = vsel %vm46, %v21, 0
  %v51 = vsel %vm46, %v22, 0
  %v54 = vsel %vm46, %v23, 0
  %v57 = vsel %vm46, %v24, 0
  %v60 = vsel %vm46, %v25, 0
  %v63 = vsel %vm46, %v26, 0
  %v66 = vsel %vm46, %v27, 0
  %v69 = vsel %vm46, %v28, 0
  %v72 = vsel %vm46, %v29, 0
  %v75 = vsel %vm46, %v30, 0
  %v78 = vsel %vm46, %v31, 0
  %v81 = vsel %vm46, %v32, 0
  %v84 = vsel %vm46, %v33, 0
  %v87 = vsel %vm46, %v34, 0
  %v90 = vsel %vm46, %v35, 0
  %v93 = vsel %vm46, %v36, 0
  %95 = vmatprep.subr.mxu0 0.0
  %96 = vmatpush1.msra.mxu0 %v37
  %97 = vmatprep.subr.mxu0 0.0
  %98 = vmatpush1.msra.mxu0 %v38
  %99 = vmatprep.subr.mxu0 0.0
  %100 = vmatpush1.msra.mxu0 0.0
  %101 = vmatprep.subr.mxu0 0.0
  %102 = vmatpush1.msra.mxu0 0.0
  %103 = vmatprep.subr.mxu0 0.0
  %104 = vmatpush1.msra.mxu0 0.0
  %105 = vmatprep.subr.mxu0 0.0
  %106 = vmatpush1.msra.mxu0 0.0
  %107 = vmatprep.subr.mxu0 0.0
  %108 = vmatpush1.msra.mxu0 0.0
  %109 = vmatprep.subr.mxu0 0.0
  %110 = vmatpush1.msra.mxu0 0.0
  %111 = vmatprep.subr.mxu0 0.0
  %112 = vmatpush1.msra.mxu0 0.0
  %113 = vmatprep.subr.mxu0 0.0
  %114 = vmatpush1.msra.mxu0 0.0
  %115 = vmatprep.subr.mxu0 0.0
  %116 = vmatpush1.msra.mxu0 0.0
  %117 = vmatprep.subr.mxu0 0.0
  %118 = vmatpush1.msra.mxu0 0.0
  %119 = vmatprep.subr.mxu0 0.0
  %120 = vmatpush1.msra.mxu0 0.0
  %121 = vmatprep.subr.mxu0 0.0
  %122 = vmatpush1.msra.mxu0 0.0
  %123 = vmatprep.subr.mxu0 0.0
  %124 = vmatpush1.msra.mxu0 0.0
  %125 = vmatprep.subr.mxu0 0.0
  %126 = vmatpush1.msra.mxu0 0.0
  %127 = vmatprep.subr.mxu0 0.0
  %128 = vmatpush1.msra.mxu0 0.0
  %129 = vmatprep.subr.mxu0 0.0
  %130 = vmatpush1.msra.mxu0 0.0
  %131 = vmatprep.subr.mxu0 0.0
  %132 = vmatpush1.msra.mxu0 0.0
  %133 = vmatprep.subr.mxu0 0.0
  %134 = vmatpush1.msra.mxu0 0.0
  %135 = vmatprep.subr.mxu0 0.0
  %136 = vmatpush1.msra.mxu0 0.0
  %137 = vmatprep.subr.mxu0 0.0
  %138 = vmatpush1.msra.mxu0 0.0
  %139 = vmatprep.subr.mxu0 0.0
  %140 = vmatpush1.msra.mxu0 0.0
  %141 = vmatprep.subr.mxu0 0.0
  %142 = vmatpush1.msra.mxu0 0.0
  %143 = vmatprep.subr.mxu0 0.0
  %144 = vmatpush1.msra.mxu0 0.0
  %145 = vmatprep.subr.mxu0 0.0
  %146 = vmatpush1.msra.mxu0 0.0
  %147 = vmatprep.subr.mxu0 0.0
  %148 = vmatpush1.msra.mxu0 0.0
  %149 = vmatprep.subr.mxu0 0.0
  %150 = vmatpush1.msra.mxu0 0.0
  %151 = vmatprep.subr.mxu0 0.0
  %152 = vmatpush1.msra.mxu0 0.0
  %153 = vmatprep.subr.mxu0 0.0
  %154 = vmatpush1.msra.mxu0 0.0
  %155 = vmatprep.subr.mxu0 0.0
  %156 = vmatpush1.msra.mxu0 0.0
  %157 = vmatprep.subr.mxu0 0.0
  %158 = vmatpush1.msra.mxu0 0.0
  %159 = vmatprep.mubr.f32.mxu0 0.0
  %160 = vmatmul.mubr.f32.gmra.mrb[0].mxu0 %v48
  %v161 = vpop.f32.mrb[0].mxu0
  %v162 = vadd.f32 %v44, %v161
  %v163 = vpop.f32.mrb[0].mxu0
  %164 = vmatprep.mubr.f32.mxu0 0.0
  %165 = vmatmul.mubr.f32.gmra.mrb[0].mxu0 %v51
  %v166 = vpop.f32.mrb[0].mxu0
  %v167 = vadd.f32 %v44, %v166
  %v168 = vpop.f32.mrb[0].mxu0
  %169 = vmatprep.mubr.f32.mxu0 0.0
  %170 = vmatmul.mubr.f32.gmra.mrb[0].mxu0 %v54
  %v171 = vpop.f32.mrb[0].mxu0
  %v172 = vadd.f32 %v44, %v171
  %v173 = vpop.f32.mrb[0].mxu0
  %174 = vmatprep.mubr.f32.mxu0 0.0
  %175 = vmatmul.mubr.f32.gmra.mrb[0].mxu0 %v57
  %v176 = vpop.f32.mrb[0].mxu0
  %v177 = vadd.f32 %v44, %v176
  %v178 = vpop.f32.mrb[0].mxu0
  %179 = vmatprep.mubr.f32.mxu0 0.0
  %180 = vmatmul.mubr.f32.gmra.mrb[0].mxu0 %v60
  %v181 = vpop.f32.mrb[0].mxu0
  %v182 = vadd.f32 %v44, %v181
  %v183 = vpop.f32.mrb[0].mxu0
  %184 = vmatprep.mubr.f32.mxu0 0.0
  %185 = vmatmul.mubr.f32.gmra.mrb[0].mxu0 %v63
  %v186 = vpop.f32.mrb[0].mxu0
  %v187 = vadd.f32 %v44, %v186
  %v188 = vpop.f32.mrb[0].mxu0
  %189 = vmatprep.mubr.f32.mxu0 0.0
  %190 = vmatmul.mubr.f32.gmra.mrb[0].mxu0 %v66
  %v191 = vpop.f32.mrb[0].mxu0
  %v192 = vadd.f32 %v44, %v191
  %v193 = vpop.f32.mrb[0].mxu0
  %194 = vmatprep.mubr.f32.mxu0 0.0
  %195 = vmatmul.mubr.f32.gmra.mrb[0].mxu0 %v69
  %v196 = vpop.f32.mrb[0].mxu0
  %v197 = vadd.f32 %v44, %v196
  %v198 = vpop.f32.mrb[0].mxu0
  %199 = vmatprep.mubr.f32.mxu0 0.0
  %200 = vmatmul.mubr.f32.gmra.mrb[0].mxu0 %v72
  %v201 = vpop.f32.mrb[0].mxu0
  %v202 = vadd.f32 %v44, %v201
  %v203 = vpop.f32.mrb[0].mxu0
  %204 = vmatprep.mubr.f32.mxu0 0.0
  %205 = vmatmul.mubr.f32.gmra.mrb[0].mxu0 %v75
  %v206 = vpop.f32.mrb[0].mxu0
  %v207 = vadd.f32 %v44, %v206
  %v208 = vpop.f32.mrb[0].mxu0
  %209 = vmatprep.mubr.f32.mxu0 0.0
  %210 = vmatmul.mubr.f32.gmra.mrb[0].mxu0 %v78
  %v211 = vpop.f32.mrb[0].mxu0
  %v212 = vadd.f32 %v44, %v211
  %v213 = vpop.f32.mrb[0].mxu0
  %214 = vmatprep.mubr.f32.mxu0 0.0
  %215 = vmatmul.mubr.f32.gmra.mrb[0].mxu0 %v81
  %v216 = vpop.f32.mrb[0].mxu0
  %v217 = vadd.f32 %v44, %v216
  %v218 = vpop.f32.mrb[0].mxu0
  %219 = vmatprep.mubr.f32.mxu0 0.0
  %220 = vmatmul.mubr.f32.gmra.mrb[0].mxu0 %v84
  %v221 = vpop.f32.mrb[0].mxu0
  %v222 = vadd.f32 %v44, %v221
  %v223 = vpop.f32.mrb[0].mxu0
  %224 = vmatprep.mubr.f32.mxu0 0.0
  %225 = vmatmul.mubr.f32.gmra.mrb[0].mxu0 %v87
  %v226 = vpop.f32.mrb[0].mxu0
  %v227 = vadd.f32 %v44, %v226
  %v228 = vpop.f32.mrb[0].mxu0
  %229 = vmatprep.mubr.f32.mxu0 0.0
  %230 = vmatmul.mubr.f32.gmra.mrb[0].mxu0 %v90
  %v231 = vpop.f32.mrb[0].mxu0
  %v232 = vadd.f32 %v44, %v231
  %v233 = vpop.f32.mrb[0].mxu0
  %234 = vmatprep.mubr.f32.mxu0 0.0
  %235 = vmatmul.mubr.f32.gmra.mrb[0].mxu0 %v93
  %v236 = vpop.f32.mrb[0].mxu0
  %v237 = vadd.f32 %v44, %v236
  %v238 = vpop.f32.mrb[0].mxu0
  %239 = vdwg.mxu0
  %v240 = vmax.f32 %v162, 0.0
  %v241 = vmax.f32 %v167, 0.0
  %v242 = vmax.f32 %v172, 0.0
  %v243 = vmax.f32 %v177, 0.0
  %v244 = vmax.f32 %v182, 0.0
  %v245 = vmax.f32 %v187, 0.0
  %v246 = vmax.f32 %v192, 0.0
  %v247 = vmax.f32 %v197, 0.0
  %v248 = vmax.f32 %v202, 0.0
  %v249 = vmax.f32 %v207, 0.0
  %v250 = vmax.f32 %v212, 0.0
  %v251 = vmax.f32 %v217, 0.0
  %v252 = vmax.f32 %v222, 0.0
  %v253 = vmax.f32 %v227, 0.0
  %v254 = vmax.f32 %v232, 0.0
  %v255 = vmax.f32 %v237, 0.0
  %v256 = vld [vmem:[%s3] sm:$0x1]
  %v258 = vlaneseq
  %v259 = vshrl.u32 %v258, 7
  %v260 = vsub.s32 0, %v259
  %v261 = vrot.slane %v256, %v260
  %v263 = vmul.f32 %v240, %v261
  %v264 = vmul.f32 %v241, %v261
  %v265 = vmul.f32 %v242, %v261
  %v266 = vmul.f32 %v243, %v261
  %v267 = vmul.f32 %v244, %v261
  %v268 = vmul.f32 %v245, %v261
  %v269 = vmul.f32 %v246, %v261
  %v270 = vmul.f32 %v247, %v261
  %v271 = vmul.f32 %v248, %v261
  %v272 = vmul.f32 %v249, %v261
  %v273 = vmul.f32 %v250, %v261
  %v274 = vmul.f32 %v251, %v261
  %v275 = vmul.f32 %v252, %v261
  %v276 = vmul.f32 %v253, %v261
  %v277 = vmul.f32 %v254, %v261
  %v278 = vmul.f32 %v255, %v261
  %vm279 = vcmask 261120
  %v280 = vsel %vm279, %v263, 0.0
  %281 = vadd.xlane.f32.xlu0 %v280
  %v282 = vpop.xlane.xlu0 %281
  %v283 = vsel %vm279, %v264, 0.0
  %284 = vadd.xlane.f32.xlu0 %v283
  %v285 = vpop.xlane.xlu0 %284
  %v286 = vsel %vm279, %v265, 0.0
  %287 = vadd.xlane.f32.xlu0 %v286
  %v288 = vpop.xlane.xlu0 %287
  %v289 = vsel %vm279, %v266, 0.0
  %290 = vadd.xlane.f32.xlu0 %v289
  %v291 = vpop.xlane.xlu0 %290
  %v292 = vsel %vm279, %v267, 0.0
  %293 = vadd.xlane.f32.xlu0 %v292
  %v294 = vpop.xlane.xlu0 %293
  %v295 = vsel %vm279, %v268, 0.0
  %296 = vadd.xlane.f32.xlu0 %v295
  %v297 = vpop.xlane.xlu0 %296
  %v298 = vsel %vm279, %v269, 0.0
  %299 = vadd.xlane.f32.xlu0 %v298
  %v300 = vpop.xlane.xlu0 %299
  %v301 = vsel %vm279, %v270, 0.0
  %302 = vadd.xlane.f32.xlu0 %v301
  %v303 = vpop.xlane.xlu0 %302
  %v304 = vsel %vm279, %v271, 0.0
  %305 = vadd.xlane.f32.xlu0 %v304
  %v306 = vpop.xlane.xlu0 %305
  %v307 = vsel %vm279, %v272, 0.0
  %308 = vadd.xlane.f32.xlu0 %v307
  %v309 = vpop.xlane.xlu0 %308
  %v310 = vsel %vm279, %v273, 0.0
  %311 = vadd.xlane.f32.xlu0 %v310
  %v312 = vpop.xlane.xlu0 %311
  %v313 = vsel %vm279, %v274, 0.0
  %314 = vadd.xlane.f32.xlu0 %v313
  %v315 = vpop.xlane.xlu0 %314
  %v316 = vsel %vm279, %v275, 0.0
  %317 = vadd.xlane.f32.xlu0 %v316
  %v318 = vpop.xlane.xlu0 %317
  %v319 = vsel %vm279, %v276, 0.0
  %320 = vadd.xlane.f32.xlu0 %v319
  %v321 = vpop.xlane.xlu0 %320
  %v322 = vsel %vm279, %v277, 0.0
  %323 = vadd.xlane.f32.xlu0 %v322
  %v324 = vpop.xlane.xlu0 %323
  %v325 = vsel %vm279, %v278, 0.0
  %326 = vadd.xlane.f32.xlu0 %v325
  %v327 = vpop.xlane.xlu0 %326
  %s328 = sld [smem:[#allocation2]]
  %v329 = vstv %s328
  %v330 = vadd.f32 %v282, %v329
  %v331 = vadd.f32 %v285, %v329
  %v332 = vadd.f32 %v288, %v329
  %v333 = vadd.f32 %v291, %v329
  %v334 = vadd.f32 %v294, %v329
  %v335 = vadd.f32 %v297, %v329
  %v336 = vadd.f32 %v300, %v329
  %v337 = vadd.f32 %v303, %v329
  %v338 = vadd.f32 %v306, %v329
  %v339 = vadd.f32 %v309, %v329
  %v340 = vadd.f32 %v312, %v329
  %v341 = vadd.f32 %v315, %v329
  %v342 = vadd.f32 %v318, %v329
  %v343 = vadd.f32 %v321, %v329
  %v344 = vadd.f32 %v324, %v329
  %v345 = vadd.f32 %v327, %v329
  %vm346 = vcmask 7168
  %347 = vst.msk [vmem:[%s5] sm:$0xff] %vm346, %v330
  %348 = vst.msk [vmem:[%s5 + $0x8] sm:$0xff] %vm346, %v331
  %349 = vst.msk [vmem:[%s5 + $0x10] sm:$0xff] %vm346, %v332
  %350 = vst.msk [vmem:[%s5 + $0x18] sm:$0xff] %vm346, %v333
  %351 = vst.msk [vmem:[%s5 + $0x20] sm:$0xff] %vm346, %v334
  %352 = vst.msk [vmem:[%s5 + $0x28] sm:$0xff] %vm346, %v335
  %353 = vst.msk [vmem:[%s5 + $0x30] sm:$0xff] %vm346, %v336
  %354 = vst.msk [vmem:[%s5 + $0x38] sm:$0xff] %vm346, %v337
  %355 = vst.msk [vmem:[%s5 + $0x40] sm:$0xff] %vm346, %v338
  %356 = vst.msk [vmem:[%s5 + $0x48] sm:$0xff] %vm346, %v339
  %357 = vst.msk [vmem:[%s5 + $0x50] sm:$0xff] %vm346, %v340
  %358 = vst.msk [vmem:[%s5 + $0x58] sm:$0xff] %vm346, %v341
  %359 = vst.msk [vmem:[%s5 + $0x60] sm:$0xff] %vm346, %v342
  %360 = vst.msk [vmem:[%s5 + $0x68] sm:$0xff] %vm346, %v343
  %361 = vst.msk [vmem:[%s5 + $0x70] sm:$0xff] %vm346, %v344
  %362 = vst.msk [vmem:[%s5 + $0x78] sm:$0xff] %vm346, %v345
  // Predicated region
  $region22: #{tpu_custom_call.1} parent=0 // pred_check
    _
  $region23: #{tpu_custom_call.1} parent=0 // pred_check_branch
    %364 = sbr.rel (0) target = $region25
  $region24: #{tpu_custom_call.1} parent=0 // pred_region
    _
  $region25: #{tpu_custom_call.1} parent=0 // pred_fallthru
    _
  // Predicated region
  $region26: #{tpu_custom_call.1} parent=0 // pred_check
    _
  $region27: #{tpu_custom_call.1} parent=0 // pred_check_branch
    %366 = sbr.rel (0) target = $region29
  $region28: #{tpu_custom_call.1} parent=0 // pred_region
    _
  $region29: #{tpu_custom_call.1} parent=0 // pred_fallthru
    _

</llo_original>
